<compile_context>
chip_gen: v7x
topology: tpu7x:2x2x1
jax: 0.10.0
libtpu: 0.0.40
codegen_flags: <defaults>
</compile_context>

<pallas_src>
import functools

import jax
import jax.numpy as jnp
from jax.experimental import pallas as pl
from jax.experimental.pallas import tpu as pltpu


def _linear_relu_pool_kernel(x_ref, w_ref, b_ref, o_ref, *, scale):
    """One row block, fully in VMEM.

    x_ref : (rows_blk, Kc)   packed activations (Hc original rows per packed row)
    w_ref : (Kc, Npad)       block-diagonal replicated Linear weight (resident)
    b_ref : (1, Npad)        replicated bias, zero-padded (resident)
    o_ref : (rows_blk, 1)    scale * sum(relu(x @ w + b)) per packed row
    """
    y = jnp.dot(x_ref[...], w_ref[...], preferred_element_type=jnp.float32)
    y = jnp.maximum(y + b_ref[...], 0.0)          # padded cols: relu(0 + 0) == 0
    # Lane reduction as an MXU mat-vec with a pre-scaled ones vector: avoids a
    # cross-lane VPU/XLU reduce over the whole (rows_blk, Npad) intermediate and
    # costs only 2*rows*Npad FLOPs (the old pooling matmul was ~128x this).
    ones = jnp.full((y.shape[1], 1), scale, dtype=jnp.float32)
    o_ref[...] = jnp.dot(y, ones, preferred_element_type=jnp.float32)


def _pick_pack_factor(h, in_f, out_f, *, max_k=512, max_w_bytes=4 << 20):
    """Largest divisor Hc of H such that Kc = Hc*in_f stays near one MXU K-tile and
    the replicated block-diagonal weight stays small and resident."""
    for hc in range(h, 0, -1):
        if h % hc:
            continue
        kc = hc * in_f
        npad = max(128, ((hc * out_f + 127) // 128) * 128)
        if kc <= max_k and kc * npad * 4 <= max_w_bytes:
            return hc
    return 1


def _pick_row_block(total_rows, row_bytes, target_bytes):
    """Largest sublane-aligned divisor of total_rows whose x block fits the byte
    target; prefers >= 4 blocks (v7x megacore + pipeline overlap) when possible."""
    divs = [d for d in range(1, total_rows + 1) if total_rows % d == 0]
    aligned = [d for d in divs if d % 8 == 0 or d == total_rows]
    fitting = [d for d in aligned if d * row_bytes <= target_bytes]
    multi = [d for d in fitting if total_rows // d >= 4]
    if multi:
        return max(multi)
    if fitting:
        return max(fitting)
    return min(aligned)   # nothing fits the target; take the smallest legal block


def _vmem_limit_bytes():
    try:
        cap = int(pltpu.get_tpu_info().vmem_capacity_bytes)
    except Exception:
        cap = 64 * 1024 * 1024        # conservative default (v7x per-core VMEM)
    return min(cap * 3 // 4, 100 * 1024 * 1024)


def convlayer_forward(x, w_lin, b_lin, *, target_block_bytes=None):
    """x: (B, C, H, W) float32 or bfloat16, W == in_features = 2*in_channels.
    w_lin: (out_f, in_f) in PyTorch Linear layout; b_lin: (out_f,).
    Returns (B, C, 1, 1) float32."""
    B, C, H, Wdim = x.shape
    out_f, in_f = w_lin.shape
    assert Wdim == in_f, "last input dim must equal Linear in_features"

    vmem_limit = _vmem_limit_bytes()
    if target_block_bytes is None:
        target_block_bytes = min(4 << 20, vmem_limit // 8)

    # ---- pack Hc rows of each (b, c) group into one lane-dense matmul row --------
    Hc = _pick_pack_factor(H, in_f, out_f)
    Hn = H // Hc                                   # packed rows per pooling group
    Kc = Hc * in_f                                 # packed contraction depth
    Npad = max(128, ((Hc * out_f + 127) // 128) * 128)   # lane-dense output width

    total_rows = B * C * Hn
    x2 = x.reshape(total_rows, Kc)                 # contiguous reinterpretation (free)

    # Block-diagonal replicated weight / tiled bias, zero-padded to Npad lanes.
    # Zero pad columns are exact: relu(0*x + 0) == 0 contributes nothing to the sum.
    w_block = jnp.kron(jnp.eye(Hc, dtype=jnp.float32), w_lin.astype(jnp.float32).T)
    w_pad = jnp.zeros((Kc, Npad), jnp.float32).at[:, : Hc * out_f].set(w_block)
    b_pad = jnp.zeros((1, Npad), jnp.float32).at[:, : Hc * out_f].set(
        jnp.tile(b_lin.astype(jnp.float32), Hc))

    # Consume x in its own dtype (no wrapper-side cast pass over x); f32 accumulate.
    if x.dtype == jnp.bfloat16:
        w_pad = w_pad.astype(jnp.bfloat16)

    row_bytes = Kc * x2.dtype.itemsize
    rows_blk = _pick_row_block(total_rows, row_bytes, target_block_bytes)
    num_blocks = total_rows // rows_blk
    scale = 1.0 / float(H * out_f)                 # AdaptiveAvgPool2d((1,1)) denom

    flops = 2 * total_rows * Kc * Npad + 2 * total_rows * Npad
    bytes_accessed = (total_rows * row_bytes
                      + w_pad.size * w_pad.dtype.itemsize
                      + b_pad.size * 4
                      + total_rows * 4)

    kernel = functools.partial(_linear_relu_pool_kernel, scale=scale)
    part = pl.pallas_call(
        kernel,
        out_shape=jax.ShapeDtypeStruct((total_rows, 1), jnp.float32),
        grid_spec=pltpu.PrefetchScalarGridSpec(
            num_scalar_prefetch=0,
            grid=(num_blocks,),
            in_specs=[
                pl.BlockSpec((rows_blk, Kc), lambda i: (i, 0)),   # x: tiled rows
                pl.BlockSpec((Kc, Npad), lambda i: (0, 0)),       # weight: resident
                pl.BlockSpec((1, Npad), lambda i: (0, 0)),        # bias: resident
            ],
            out_specs=pl.BlockSpec((rows_blk, 1), lambda i: (i, 0)),
        ),
        compiler_params=pltpu.CompilerParams(
            dimension_semantics=("parallel",),     # megacore-shard row blocks (v7x)
            vmem_limit_bytes=vmem_limit,
        ),
        cost_estimate=pl.CostEstimate(
            flops=flops, transcendentals=0, bytes_accessed=bytes_accessed),
    )(x2, w_pad, b_pad)

    pooled = part[:, 0]
    if Hn > 1:
        # Rare fallback (H too large to pack one whole group per row): finish the
        # mean over Hn per-chunk partial sums -- only B*C*Hn floats of extra work.
        pooled = pooled.reshape(B * C, Hn).sum(axis=-1)
    return pooled.reshape(B, C, 1, 1)


if __name__ == "__main__":
    # Module config: in_channels = 8  =>  Linear(16, 8)
    in_channels = 8
    in_features = in_channels * 2
    out_features = in_channels

    B, C, H = 2, 4, 16
    W = in_features                       # last dim must equal in_channels * 2

    key = jax.random.PRNGKey(0)
    kx, kw, kb = jax.random.split(key, 3)

    # PyTorch Linear default init: U(-1/sqrt(fan_in), 1/sqrt(fan_in))
    bound = 1.0 / jnp.sqrt(jnp.float32(in_features))
    w_lin = jax.random.uniform(kw, (out_features, in_features),
                               minval=-bound, maxval=bound, dtype=jnp.float32)
    b_lin = jax.random.uniform(kb, (out_features,),
                               minval=-bound, maxval=bound, dtype=jnp.float32)
    x = jax.random.normal(kx, (B, C, H, W), dtype=jnp.float32)

    # Plain-JAX reference (same math).
    ref = jnp.maximum(jnp.einsum("bchw,ow->bcho", x, w_lin) + b_lin, 0.0)
    ref = jnp.mean(ref, axis=(2, 3), keepdims=True)

    out = convlayer_forward(x, w_lin, b_lin)
    jax.block_until_ready(out)
    assert out.shape == (B, C, 1, 1)
    assert jnp.allclose(out, ref, atol=1e-5, rtol=1e-5)

    # Caller-provided bf16 activations (no wrapper-side cast of x); f32 accumulate.
    out_bf16 = convlayer_forward(x.astype(jnp.bfloat16), w_lin, b_lin)
    jax.block_until_ready(out_bf16)
    assert jnp.allclose(out_bf16, ref, atol=2e-2, rtol=2e-2)

    print("KERNEL_OK")
</pallas_src>

<mosaic_0001>
module attributes {stable_mosaic.version = 11 : i64} {
  func.func @_linear_relu_pool_kernel(%arg0: i32, %arg1: memref<8x256xf32, #tpu.memory_space<vmem>>, %arg2: memref<256x128xf32, #tpu.memory_space<vmem>>, %arg3: memref<1x128xf32, #tpu.memory_space<vmem>>, %arg4: memref<8x1xf32, #tpu.memory_space<vmem>>) attributes {dimension_semantics = [#tpu.dimension_semantics<parallel>], iteration_bounds = array<i64: 1>, scalar_prefetch = 0 : i64, scratch_operands = 0 : i64, tpu.core_type = #tpu.core_type<tc>, window_params = [{transform_indices = @transform_0, window_bounds = array<i64: 8, 256>}, {pipeline_mode = #tpu.pipeline_mode<synchronous>, transform_indices = @transform_1, window_bounds = array<i64: 256, 128>}, {pipeline_mode = #tpu.pipeline_mode<synchronous>, transform_indices = @transform_2, window_bounds = array<i64: 1, 128>}, {transform_indices = @transform_3, window_bounds = array<i64: 8, 1>}]} {
    %c0 = arith.constant 0 : index
    %c0_0 = arith.constant 0 : index
    %0 = vector.load %arg1[%c0, %c0_0] : memref<8x256xf32, #tpu.memory_space<vmem>>, vector<8x256xf32>
    %c0_1 = arith.constant 0 : index
    %c0_2 = arith.constant 0 : index
    %1 = vector.load %arg2[%c0_1, %c0_2] : memref<256x128xf32, #tpu.memory_space<vmem>>, vector<256x128xf32>
    %cst = arith.constant dense<0.000000e+00> : vector<8x128xf32>
    %2 = tpu.matmul %0, %1, %cst {dimension_numbers = #tpu.dot_dimension_numbers<[1], [0], [0], [1], [0, 0, 1, 1], [], []>} : vector<8x256xf32>, vector<256x128xf32>, vector<8x128xf32> -> vector<8x128xf32>
    %c0_3 = arith.constant 0 : index
    %c0_4 = arith.constant 0 : index
    %3 = vector.load %arg3[%c0_3, %c0_4] : memref<1x128xf32, #tpu.memory_space<vmem>>, vector<1x128xf32>
    %4 = vector.broadcast %3 : vector<1x128xf32> to vector<8x128xf32>
    %5 = arith.addf %2, %4 : vector<8x128xf32>
    %cst_5 = arith.constant 0.000000e+00 : f32
    %6 = vector.broadcast %cst_5 : f32 to vector<8x128xf32>
    %7 = arith.maximumf %5, %6 : vector<8x128xf32>
    %cst_6 = arith.constant 7.812500e-03 : f32
    %8 = vector.broadcast %cst_6 : f32 to vector<128x1xf32>
    %cst_7 = arith.constant dense<0.000000e+00> : vector<8x1xf32>
    %9 = tpu.matmul %7, %8, %cst_7 {dimension_numbers = #tpu.dot_dimension_numbers<[1], [0], [0], [1], [0, 0, 1, 1], [], []>} : vector<8x128xf32>, vector<128x1xf32>, vector<8x1xf32> -> vector<8x1xf32>
    %c0_8 = arith.constant 0 : index
    %c0_9 = arith.constant 0 : index
    %10 = vector.load %arg4[%c0_8, %c0_9] : memref<8x1xf32, #tpu.memory_space<vmem>>, vector<8x1xf32>
    tpu.vector_store %arg4[%c0_8, %c0_9], %9 {strides = array<i32>} : memref<8x1xf32, #tpu.memory_space<vmem>>, vector<8x1xf32>,
    return
  }
  func.func @transform_0(%arg0: i32) -> (i32, i32) {
    %c0_i32 = arith.constant 0 : i32
    %c0_i32_0 = arith.constant 0 : i32
    return %arg0, %c0_i32 : i32, i32
  }
  func.func @transform_1(%arg0: i32) -> (i32, i32) {
    %c0_i32 = arith.constant 0 : i32
    %c0_i32_0 = arith.constant 0 : i32
    %c0_i32_1 = arith.constant 0 : i32
    return %c0_i32, %c0_i32_0 : i32, i32
  }
  func.func @transform_2(%arg0: i32) -> (i32, i32) {
    %c0_i32 = arith.constant 0 : i32
    %c0_i32_0 = arith.constant 0 : i32
    %c0_i32_1 = arith.constant 0 : i32
    return %c0_i32, %c0_i32_0 : i32, i32
  }
  func.func @transform_3(%arg0: i32) -> (i32, i32) {
    %c0_i32 = arith.constant 0 : i32
    %c0_i32_0 = arith.constant 0 : i32
    return %arg0, %c0_i32 : i32, i32
  }
}

</mosaic_0001>

<llo_original>
// kernel: tpu_custom_call.1
$region0: #{tpu_custom_call.1}
  #allocation0 [shape = 'u32[]', space=smem, size = 0x4, offset = 0x4, fixed_abs, tag = 'smem constant byte address 0x4 - core index']
  #allocation1 [shape = 'u32[144,128]{1,0:T(1,128)}', space=vmem, size = 0x12000, scoped, tag = 'internal scratch']
  %s0 = inlined_call_operand.hbm [shape: f32[8,256], index: 0, kind: input, shape index: {}]
  %s1 = inlined_call_operand.hbm [shape: f32[256,128], index: 1, kind: input, shape index: {}]
  %s2 = inlined_call_operand.vmem [shape: f32[1,128], index: 2, kind: input, shape index: {}]
  %s3 = inlined_call_operand.vmem [shape: f32[8,1], index: 3, kind: output, shape index: {}]
  %s4 = sld [smem:[#allocation0]]
  $region30: #{tpu_custom_call.1} parent=0
    _
  %s6 = ssub.s32 1, %s4
  %s7 = scalar_select 0, %s6, %s4
  $region1: #{tpu_custom_call.1} parent=0
    #allocation2 [shape = 'u8[8192]{0}', space=vmem, size = 0x2000, scoped, tag = 'input window, operand 0, single buffered']
    #allocation3 [shape = 's32[1]{0}', space=sflag, size = 0x4, scoped, tag = 'scoped memory for tpu_custom_call.1']
    #allocation4 [shape = 'u8[131072]{0}', space=vmem, size = 0x20000, scoped, tag = 'input window, operand 1, single buffered']
    #allocation5 [shape = 's32[1]{0}', space=sflag, size = 0x4, scoped, tag = 'scoped memory for tpu_custom_call.1']
    %8 = vsyncpa [#allocation3], 0
    %9 = vsyncpa [#allocation5], 0
    // Predicated region
    $region2: #{tpu_custom_call.1} parent=1 // pred_check
      _
    $region3: #{tpu_custom_call.1} parent=1 // pred_check_branch
      %11 = sbr.rel (0) target = $region5
    $region4: #{tpu_custom_call.1} parent=1 // pred_region
      %s13 = ssub.s32 256, 256
      %14 = vsyncadd [#allocation3], %s13
      %s16 = sshll.u32 [#allocation2], 4
      %s17 = int_to_ptr.vmem [resolvable:$true] %s16
      %19 = dma.hbm_to_vmem [thread:$0]  %s0, 256, %s17, [#allocation3]
    $region5: #{tpu_custom_call.1} parent=1 // pred_fallthru
      _
    // Predicated region
    $region6: #{tpu_custom_call.1} parent=1 // pred_check
      _
    $region7: #{tpu_custom_call.1} parent=1 // pred_check_branch
      %21 = sbr.rel (0) target = $region9
    $region8: #{tpu_custom_call.1} parent=1 // pred_region
      %s23 = ssub.s32 4096, 4096
      %24 = vsyncadd [#allocation5], %s23
      %s25 = sshll.u32 [#allocation4], 4
      %s26 = int_to_ptr.vmem [resolvable:$true] %s25
      %31 = dma.hbm_to_vmem [thread:$0]  %s1, 4096, %s26, [#allocation5], 128, 128, 8
    $region9: #{tpu_custom_call.1} parent=1 // pred_fallthru
      _
    // Predicated region
    $region10: #{tpu_custom_call.1} parent=1 // pred_check
      _
    $region11: #{tpu_custom_call.1} parent=1 // pred_check_branch
      %33 = sbr.rel (0) target = $region13
    $region12: #{tpu_custom_call.1} parent=1 // pred_region
      _
    $region13: #{tpu_custom_call.1} parent=1 // pred_fallthru
      _
    // Predicated region
    $region14: #{tpu_custom_call.1} parent=1 // pred_check
      _
    $region15: #{tpu_custom_call.1} parent=1 // pred_check_branch
      %35 = sbr.rel (0) target = $region17
    $region16: #{tpu_custom_call.1} parent=1 // pred_region
      %36 = dma.done [#allocation3], 256
    $region17: #{tpu_custom_call.1} parent=1 // pred_fallthru
      _
    // Predicated region
    $region18: #{tpu_custom_call.1} parent=1 // pred_check
      _
    $region19: #{tpu_custom_call.1} parent=1 // pred_check_branch
      %38 = sbr.rel (0) target = $region21
    $region20: #{tpu_custom_call.1} parent=1 // pred_region
      %39 = dma.done [#allocation5], 4096
    $region21: #{tpu_custom_call.1} parent=1 // pred_fallthru
      _
    %v40 = vld [vmem:[#allocation2] sm:$0xff]
    %v41 = vld [vmem:[#allocation2 + $0x8] sm:$0xff]
    %v42 = vld [vmem:[#allocation4] sm:$0xff]
    %v43 = vld [vmem:[#allocation4 + $0x8] sm:$0xff]
    %v44 = vld [vmem:[#allocation4 + $0x10] sm:$0xff]
    %v45 = vld [vmem:[#allocation4 + $0x18] sm:$0xff]
    %v46 = vld [vmem:[#allocation4 + $0x20] sm:$0xff]
    %v47 = vld [vmem:[#allocation4 + $0x28] sm:$0xff]
    %v48 = vld [vmem:[#allocation4 + $0x30] sm:$0xff]
    %v49 = vld [vmem:[#allocation4 + $0x38] sm:$0xff]
    %v50 = vld [vmem:[#allocation4 + $0x40] sm:$0xff]
    %v51 = vld [vmem:[#allocation4 + $0x48] sm:$0xff]
    %v52 = vld [vmem:[#allocation4 + $0x50] sm:$0xff]
    %v53 = vld [vmem:[#allocation4 + $0x58] sm:$0xff]
    %v54 = vld [vmem:[#allocation4 + $0x60] sm:$0xff]
    %v55 = vld [vmem:[#allocation4 + $0x68] sm:$0xff]
    %v56 = vld [vmem:[#allocation4 + $0x70] sm:$0xff]
    %v57 = vld [vmem:[#allocation4 + $0x78] sm:$0xff]
    %v58 = vld [vmem:[#allocation4 + $0x80] sm:$0xff]
    %v59 = vld [vmem:[#allocation4 + $0x88] sm:$0xff]
    %v60 = vld [vmem:[#allocation4 + $0x90] sm:$0xff]
    %v61 = vld [vmem:[#allocation4 + $0x98] sm:$0xff]
    %v62 = vld [vmem:[#allocation4 + $0xa0] sm:$0xff]
    %v63 = vld [vmem:[#allocation4 + $0xa8] sm:$0xff]
    %v64 = vld [vmem:[#allocation4 + $0xb0] sm:$0xff]
    %v65 = vld [vmem:[#allocation4 + $0xb8] sm:$0xff]
    %v66 = vld [vmem:[#allocation4 + $0xc0] sm:$0xff]
    %v67 = vld [vmem:[#allocation4 + $0xc8] sm:$0xff]
    %v68 = vld [vmem:[#allocation4 + $0xd0] sm:$0xff]
    %v69 = vld [vmem:[#allocation4 + $0xd8] sm:$0xff]
    %v70 = vld [vmem:[#allocation4 + $0xe0] sm:$0xff]
    %v71 = vld [vmem:[#allocation4 + $0xe8] sm:$0xff]
    %v72 = vld [vmem:[#allocation4 + $0xf0] sm:$0xff]
    %v73 = vld [vmem:[#allocation4 + $0xf8] sm:$0xff]
    %v74 = vld [vmem:[%s2] sm:$0x1]
    %v76 = vlaneseq
    %v77 = vshrl.u32 %v76, 7
    %v78 = vsub.s32 0, %v77
    %v79 = vrot.slane %v74, %v78
    %81 = vmatprep.subr.mxu0 0.0
    %82 = vmatpush1.msra.mxu0 %v42
    %83 = vmatprep.subr.mxu0 0.0
    %84 = vmatpush1.msra.mxu0 %v43
    %85 = vmatprep.subr.mxu0 0.0
    %86 = vmatpush1.msra.mxu0 %v44
    %87 = vmatprep.subr.mxu0 0.0
    %88 = vmatpush1.msra.mxu0 %v45
    %89 = vmatprep.subr.mxu0 0.0
    %90 = vmatpush1.msra.mxu0 %v46
    %91 = vmatprep.subr.mxu0 0.0
    %92 = vmatpush1.msra.mxu0 %v47
    %93 = vmatprep.subr.mxu0 0.0
    %94 = vmatpush1.msra.mxu0 %v48
    %95 = vmatprep.subr.mxu0 0.0
    %96 = vmatpush1.msra.mxu0 %v49
    %97 = vmatprep.subr.mxu0 0.0
    %98 = vmatpush1.msra.mxu0 %v50
    %99 = vmatprep.subr.mxu0 0.0
    %100 = vmatpush1.msra.mxu0 %v51
    %101 = vmatprep.subr.mxu0 0.0
    %102 = vmatpush1.msra.mxu0 %v52
    %103 = vmatprep.subr.mxu0 0.0
    %104 = vmatpush1.msra.mxu0 %v53
    %105 = vmatprep.subr.mxu0 0.0
    %106 = vmatpush1.msra.mxu0 %v54
    %107 = vmatprep.subr.mxu0 0.0
    %108 = vmatpush1.msra.mxu0 %v55
    %109 = vmatprep.subr.mxu0 0.0
    %110 = vmatpush1.msra.mxu0 %v56
    %111 = vmatprep.subr.mxu0 0.0
    %112 = vmatpush1.msra.mxu0 %v57
    %113 = vmatprep.subr.mxu0 0.0
    %114 = vmatpush1.msra.mxu0 %v58
    %115 = vmatprep.subr.mxu0 0.0
    %116 = vmatpush1.msra.mxu0 %v59
    %117 = vmatprep.subr.mxu0 0.0
    %118 = vmatpush1.msra.mxu0 %v60
    %119 = vmatprep.subr.mxu0 0.0
    %120 = vmatpush1.msra.mxu0 %v61
    %121 = vmatprep.subr.mxu0 0.0
    %122 = vmatpush1.msra.mxu0 %v62
    %123 = vmatprep.subr.mxu0 0.0
    %124 = vmatpush1.msra.mxu0 %v63
    %125 = vmatprep.subr.mxu0 0.0
    %126 = vmatpush1.msra.mxu0 %v64
    %127 = vmatprep.subr.mxu0 0.0
    %128 = vmatpush1.msra.mxu0 %v65
    %129 = vmatprep.subr.mxu0 0.0
    %130 = vmatpush1.msra.mxu0 %v66
    %131 = vmatprep.subr.mxu0 0.0
    %132 = vmatpush1.msra.mxu0 %v67
    %133 = vmatprep.subr.mxu0 0.0
    %134 = vmatpush1.msra.mxu0 %v68
    %135 = vmatprep.subr.mxu0 0.0
    %136 = vmatpush1.msra.mxu0 %v69
    %137 = vmatprep.subr.mxu0 0.0
    %138 = vmatpush1.msra.mxu0 %v70
    %139 = vmatprep.subr.mxu0 0.0
    %140 = vmatpush1.msra.mxu0 %v71
    %141 = vmatprep.subr.mxu0 0.0
    %142 = vmatpush1.msra.mxu0 %v72
    %143 = vmatprep.subr.mxu0 0.0
    %144 = vmatpush1.msra.mxu0 %v73
    %145 = vmatprep.mubr.f32.mxu0 %v41
    %146 = vmatmul.mubr.f32.gmra.mrb[0].mxu0 %v40
    %v147 = vpop.f32.mrb[0].mxu0
    %v148 = vadd.f32 %v79, %v147
    %v149 = vpop.f32.mrb[0].mxu0
    %150 = vdwg.mxu0
    %v151 = vmax.f32 %v148, 0.0
    %152 = vmatprep.subr.mxu0 0.0
    %153 = vmatpush1.msra.mxu0 0.0078125
    %154 = vmatprep.subr.mxu0 0.0
    %155 = vmatpush1.msra.mxu0 0.0078125
    %156 = vmatprep.subr.mxu0 0.0
    %157 = vmatpush1.msra.mxu0 0.0078125
    %158 = vmatprep.subr.mxu0 0.0
    %159 = vmatpush1.msra.mxu0 0.0078125
    %160 = vmatprep.subr.mxu0 0.0
    %161 = vmatpush1.msra.mxu0 0.0078125
    %162 = vmatprep.subr.mxu0 0.0
    %163 = vmatpush1.msra.mxu0 0.0078125
    %164 = vmatprep.subr.mxu0 0.0
    %165 = vmatpush1.msra.mxu0 0.0078125
    %166 = vmatprep.subr.mxu0 0.0
    %167 = vmatpush1.msra.mxu0 0.0078125
    %168 = vmatprep.subr.mxu0 0.0
    %169 = vmatpush1.msra.mxu0 0.0078125
    %170 = vmatprep.subr.mxu0 0.0
    %171 = vmatpush1.msra.mxu0 0.0078125
    %172 = vmatprep.subr.mxu0 0.0
    %173 = vmatpush1.msra.mxu0 0.0078125
    %174 = vmatprep.subr.mxu0 0.0
    %175 = vmatpush1.msra.mxu0 0.0078125
    %176 = vmatprep.subr.mxu0 0.0
    %177 = vmatpush1.msra.mxu0 0.0078125
    %178 = vmatprep.subr.mxu0 0.0
    %179 = vmatpush1.msra.mxu0 0.0078125
    %180 = vmatprep.subr.mxu0 0.0
    %181 = vmatpush1.msra.mxu0 0.0078125
    %182 = vmatprep.subr.mxu0 0.0
    %183 = vmatpush1.msra.mxu0 0.0078125
    %184 = vmatprep.subr.mxu0 0.0
    %185 = vmatpush1.msra.mxu0 0.0
    %186 = vmatprep.subr.mxu0 0.0
    %187 = vmatpush1.msra.mxu0 0.0
    %188 = vmatprep.subr.mxu0 0.0
    %189 = vmatpush1.msra.mxu0 0.0
    %190 = vmatprep.subr.mxu0 0.0
    %191 = vmatpush1.msra.mxu0 0.0
    %192 = vmatprep.subr.mxu0 0.0
    %193 = vmatpush1.msra.mxu0 0.0
    %194 = vmatprep.subr.mxu0 0.0
    %195 = vmatpush1.msra.mxu0 0.0
    %196 = vmatprep.subr.mxu0 0.0
    %197 = vmatpush1.msra.mxu0 0.0
    %198 = vmatprep.subr.mxu0 0.0
    %199 = vmatpush1.msra.mxu0 0.0
    %200 = vmatprep.subr.mxu0 0.0
    %201 = vmatpush1.msra.mxu0 0.0
    %202 = vmatprep.subr.mxu0 0.0
    %203 = vmatpush1.msra.mxu0 0.0
    %204 = vmatprep.subr.mxu0 0.0
    %205 = vmatpush1.msra.mxu0 0.0
    %206 = vmatprep.subr.mxu0 0.0
    %207 = vmatpush1.msra.mxu0 0.0
    %208 = vmatprep.subr.mxu0 0.0
    %209 = vmatpush1.msra.mxu0 0.0
    %210 = vmatprep.subr.mxu0 0.0
    %211 = vmatpush1.msra.mxu0 0.0
    %212 = vmatprep.subr.mxu0 0.0
    %213 = vmatpush1.msra.mxu0 0.0
    %214 = vmatprep.subr.mxu0 0.0
    %215 = vmatpush1.msra.mxu0 0.0
    %216 = vmatprep.mubr.f32.mxu0 0.0
    %217 = vmatmul.mubr.f32.gmra.mrb[0].mxu0 %v151
    %v218 = vpop.f32.mrb[0].mxu0
    %v219 = vadd.f32 0.0, %v218
    %v220 = vpop.f32.mrb[0].mxu0
    %221 = vdwg.mxu0
    %vm222 = vcmask 7168
    %223 = vst.msk [vmem:[%s3] sm:$0xff] %vm222, %v219
    // Predicated region
    $region22: #{tpu_custom_call.1} parent=1 // pred_check
      _
    $region23: #{tpu_custom_call.1} parent=1 // pred_check_branch
      %225 = sbr.rel (0) target = $region25
    $region24: #{tpu_custom_call.1} parent=1 // pred_region
      _
    $region25: #{tpu_custom_call.1} parent=1 // pred_fallthru
      _
    // Predicated region
    $region26: #{tpu_custom_call.1} parent=1 // pred_check
      _
    $region27: #{tpu_custom_call.1} parent=1 // pred_check_branch
      %227 = sbr.rel (0) target = $region29
    $region28: #{tpu_custom_call.1} parent=1 // pred_region
      _
    $region29: #{tpu_custom_call.1} parent=1 // pred_fallthru
      _
    %228 = vsyncpa [#allocation3], 1
    %229 = vsyncpa [#allocation5], 1

</llo_original>
